<compile_context>
chip_gen: v7x
topology: tpu7x:2x2x1
jax: 0.10.0
libtpu: 0.0.40
codegen_flags: <defaults>
</compile_context>

<pallas_src>
import functools

import jax
import jax.numpy as jnp
from jax.experimental import pallas as pl
from jax.experimental.pallas import tpu as pltpu

_HALF_LOG_2PI = 0.9189385332046727  # 0.5 * log(2*pi)


def _logprob_kernel(z_ref, logp_ref):
    """Standard-normal log-prob summed over the feature dim, stored lane-dense.

    z_ref    : (TB, D) VMEM input tile  (batch rows on sublanes, D on lanes)
    logp_ref : (1, TB) VMEM output tile (batch on the LANE axis -> dense vst)
    """
    z = z_ref[...].astype(jnp.float32)
    d = z.shape[1]

    neg_half_sq = -0.5 * (z * z)                      # VPU elementwise, f32

    # Row-sum over D *and* relayout (TB,) column -> (1, TB) lane-dense row in
    # a single MXU matvec:  ones(1, D) @ neg_half_sq.T  ->  (1, TB)
    ones_row = jnp.ones((1, d), dtype=jnp.float32)
    row_sum = jnp.dot(ones_row, neg_half_sq.T,
                      preferred_element_type=jnp.float32)

    # sum_d (-0.5 z^2 - 0.5*log 2pi) == row_sum - D * 0.5*log 2pi.
    # Identity flow => log_det_inv == 0, so nothing else to add.
    logp_ref[...] = row_sum - d * _HALF_LOG_2PI


def _round_up(n, m):
    return -(-n // m) * m


@functools.partial(jax.jit, static_argnames=("max_block_rows",))
def flow_forward_and_log_prob(z, *, max_block_rows=1024):
    """Identity Flow with a standard-normal base distribution.

    Returns (x, log_det, log_prob) for z of shape (B, D):
      x = f(z) = z           (identity transform; no kernel copy needed)
      log_det = 0            (constant; produced host-side, no DMA)
      log_prob = N(z;0,I).log_prob(z).sum(dim=1) + log_det_inv   (Pallas kernel)
    """
    # TODO(synk): Flow.forward/inverse are abstract in the PyTorch base class;
    # the identity transform is the concrete stand-in implemented here.
    B, D = z.shape

    # ---- tile selection over the batch axis --------------------------------
    b8 = _round_up(B, 8)
    if b8 <= max_block_rows:
        tb = b8                                   # single tile over the batch
    else:
        # Multi-tile: lane-dense out block needs TB % 128 == 0.  Also keep the
        # f32 input tile <= ~8 MiB so the double-buffered in/out streams stay
        # well under v7x's 64 MiB VMEM (32 MiB default scoped limit).
        rows_budget = max(128, ((8 << 20) // (D * 4)) // 128 * 128)
        tb = min(_round_up(max_block_rows, 128), rows_budget)
    bp = _round_up(B, tb)
    grid = (bp // tb,)

    z_in = z if bp == B else jnp.pad(z, ((0, bp - B), (0, 0)))

    logp_row = pl.pallas_call(
        _logprob_kernel,
        out_shape=jax.ShapeDtypeStruct((1, bp), jnp.float32),
        grid=grid,
        in_specs=[pl.BlockSpec((tb, D), lambda i: (i, 0))],
        out_specs=pl.BlockSpec((1, tb), lambda i: (0, i)),
        compiler_params=pltpu.CompilerParams(
            dimension_semantics=("parallel",),    # megacore-shard on v7x
        ),
    )(z_in)

    log_prob = logp_row[0, :B]
    x = z                                         # identity: no HBM copy
    log_det = jnp.zeros((B,), jnp.float32)        # constant zero, host-side
    return x, log_det, log_prob


if __name__ == "__main__":
    key = jax.random.PRNGKey(0)

    # Small shapes consistent with the module's (B, D) log_prob path.
    B, D = 8, 32
    z = jax.random.normal(key, (B, D), dtype=jnp.float32)

    x, log_det, log_prob = flow_forward_and_log_prob(z)
    jax.block_until_ready((x, log_det, log_prob))

    ref_logp = jnp.sum(-0.5 * z * z - _HALF_LOG_2PI, axis=1)
    assert x.shape == (B, D) and log_det.shape == (B,) and log_prob.shape == (B,)
    assert jnp.allclose(x, z)
    assert jnp.allclose(log_det, jnp.zeros((B,), jnp.float32))
    assert jnp.allclose(log_prob, ref_logp, rtol=1e-5, atol=1e-4)

    # Exercise the tiled (multi-block, padded-batch) path as well.
    B2, D2 = 300, 32
    z2 = jax.random.normal(jax.random.PRNGKey(1), (B2, D2), dtype=jnp.float32)
    x2, ld2, lp2 = flow_forward_and_log_prob(z2, max_block_rows=128)
    jax.block_until_ready((x2, ld2, lp2))
    ref_lp2 = jnp.sum(-0.5 * z2 * z2 - _HALF_LOG_2PI, axis=1)
    assert lp2.shape == (B2,) and ld2.shape == (B2,)
    assert jnp.allclose(lp2, ref_lp2, rtol=1e-5, atol=1e-4)

    print("KERNEL_OK")
</pallas_src>

<mosaic_0001>
module attributes {stable_mosaic.version = 11 : i64} {
  func.func @_logprob_kernel(%arg0: i32, %arg1: memref<8x32xf32, #tpu.memory_space<vmem>>, %arg2: memref<1x8xf32, #tpu.memory_space<vmem>>) attributes {dimension_semantics = [#tpu.dimension_semantics<parallel>], iteration_bounds = array<i64: 1>, scalar_prefetch = 0 : i64, scratch_operands = 0 : i64, tpu.core_type = #tpu.core_type<tc>, window_params = [{transform_indices = @transform_0, window_bounds = array<i64: 8, 32>}, {transform_indices = @transform_1, window_bounds = array<i64: 1, 8>}]} {
    %c0 = arith.constant 0 : index
    %c0_0 = arith.constant 0 : index
    %0 = vector.load %arg1[%c0, %c0_0] : memref<8x32xf32, #tpu.memory_space<vmem>>, vector<8x32xf32>
    %1 = arith.mulf %0, %0 : vector<8x32xf32>
    %cst = arith.constant -5.000000e-01 : f32
    %2 = vector.broadcast %cst : f32 to vector<8x32xf32>
    %3 = arith.mulf %2, %1 : vector<8x32xf32>
    %cst_1 = arith.constant 1.000000e+00 : f32
    %4 = vector.broadcast %cst_1 : f32 to vector<1x32xf32>
    %5 = tpu.transpose %3, [1, 0] : vector<8x32xf32> -> vector<32x8xf32>
    %cst_2 = arith.constant dense<0.000000e+00> : vector<1x8xf32>
    %6 = tpu.matmul %4, %5, %cst_2 {dimension_numbers = #tpu.dot_dimension_numbers<[1], [0], [0], [1], [0, 0, 1, 1], [], []>} : vector<1x32xf32>, vector<32x8xf32>, vector<1x8xf32> -> vector<1x8xf32>
    %cst_3 = arith.constant 29.4060326 : f32
    %7 = vector.broadcast %cst_3 : f32 to vector<1x8xf32>
    %8 = arith.subf %6, %7 : vector<1x8xf32>
    %c0_4 = arith.constant 0 : index
    %c0_5 = arith.constant 0 : index
    %9 = vector.load %arg2[%c0_4, %c0_5] : memref<1x8xf32, #tpu.memory_space<vmem>>, vector<1x8xf32>
    tpu.vector_store %arg2[%c0_4, %c0_5], %8 {strides = array<i32>} : memref<1x8xf32, #tpu.memory_space<vmem>>, vector<1x8xf32>,
    return
  }
  func.func @transform_0(%arg0: i32) -> (i32, i32) {
    %c0_i32 = arith.constant 0 : i32
    %c0_i32_0 = arith.constant 0 : i32
    return %arg0, %c0_i32 : i32, i32
  }
  func.func @transform_1(%arg0: i32) -> (i32, i32) {
    %c0_i32 = arith.constant 0 : i32
    %c0_i32_0 = arith.constant 0 : i32
    return %c0_i32, %arg0 : i32, i32
  }
}

</mosaic_0001>

<llo_original>
// kernel: flow_forward_and_log_prob.1
$region0: #{flow_forward_and_log_prob.1}
  #allocation0 [shape = 'u32[]', space=smem, size = 0x4, offset = 0x4, fixed_abs, tag = 'smem constant byte address 0x4 - core index']
  #allocation1 [shape = 'u32[144,128]{1,0:T(1,128)}', space=vmem, size = 0x12000, scoped, tag = 'internal scratch']
  %s0 = inlined_call_operand.hbm [shape: f32[8,32], index: 0, kind: input, shape index: {}]
  %s1 = inlined_call_operand.hbm [shape: f32[1,8], index: 1, kind: output, shape index: {}]
  %s2 = sld [smem:[#allocation0]]
  $region18: #{flow_forward_and_log_prob.1} parent=0
    _
  %s4 = ssub.s32 1, %s2
  %s5 = scalar_select 0, %s4, %s2
  $region1: #{flow_forward_and_log_prob.1} parent=0
    #allocation2 [shape = 'u8[4096]{0}', space=vmem, size = 0x1000, scoped, tag = 'input window, operand 0, single buffered']
    #allocation3 [shape = 's32[1]{0}', space=sflag, size = 0x4, scoped, tag = 'scoped memory for flow_forward_and_log_prob.1']
    #allocation4 [shape = 's32[1]{0}', space=sflag, size = 0x4, scoped, tag = 'scoped memory for flow_forward_and_log_prob.1']
    #allocation5 [shape = 'u8[512]{0}', space=vmem, size = 0x400, scoped, tag = 'output window, operand 0, single buffered']
    %6 = vsyncpa [#allocation3], 0
    %7 = vsyncpa [#allocation4], 0
    // Predicated region
    $region2: #{flow_forward_and_log_prob.1} parent=1 // pred_check
      _
    $region3: #{flow_forward_and_log_prob.1} parent=1 // pred_check_branch
      %9 = sbr.rel (0) target = $region5
    $region4: #{flow_forward_and_log_prob.1} parent=1 // pred_region
      %s11 = ssub.s32 128, 128
      %12 = vsyncadd [#allocation3], %s11
      %s14 = sshll.u32 [#allocation2], 4
      %s15 = int_to_ptr.vmem [resolvable:$true] %s14
      %17 = dma.hbm_to_vmem [thread:$0]  %s0, 128, %s15, [#allocation3]
    $region5: #{flow_forward_and_log_prob.1} parent=1 // pred_fallthru
      _
    // Predicated region
    $region6: #{flow_forward_and_log_prob.1} parent=1 // pred_check
      _
    $region7: #{flow_forward_and_log_prob.1} parent=1 // pred_check_branch
      %19 = sbr.rel (0) target = $region9
    $region8: #{flow_forward_and_log_prob.1} parent=1 // pred_region
      %20 = dma.done [#allocation3], 128
    $region9: #{flow_forward_and_log_prob.1} parent=1 // pred_fallthru
      _
    %v21 = vld [vmem:[#allocation2] sm:$0xff]
    %v22 = vmul.f32 %v21, %v21
    %v23 = vmul.f32 %v22, -0.5
    %vm24 = vcmask 261120
    %v26 = vsel %vm24, 1.0, 0
    %v29 = vsel %vm24, %v23, 0
    %31 = vmatprep.subr.mxu0 0.0
    %32 = vmatpush1.xpose.msra.mxu0 %v29
    %33 = vmatprep.subr.mxu0 0.0
    %34 = vmatpush1.xpose.msra.mxu0 0.0
    %35 = vmatprep.subr.mxu0 0.0
    %36 = vmatpush1.xpose.msra.mxu0 0.0
    %37 = vmatprep.subr.mxu0 0.0
    %38 = vmatpush1.xpose.msra.mxu0 0.0
    %39 = vmatprep.subr.mxu0 0.0
    %40 = vmatpush1.xpose.msra.mxu0 0.0
    %41 = vmatprep.subr.mxu0 0.0
    %42 = vmatpush1.xpose.msra.mxu0 0.0
    %43 = vmatprep.subr.mxu0 0.0
    %44 = vmatpush1.xpose.msra.mxu0 0.0
    %45 = vmatprep.subr.mxu0 0.0
    %46 = vmatpush1.xpose.msra.mxu0 0.0
    %47 = vmatprep.subr.mxu0 0.0
    %48 = vmatpush1.xpose.msra.mxu0 0.0
    %49 = vmatprep.subr.mxu0 0.0
    %50 = vmatpush1.xpose.msra.mxu0 0.0
    %51 = vmatprep.subr.mxu0 0.0
    %52 = vmatpush1.xpose.msra.mxu0 0.0
    %53 = vmatprep.subr.mxu0 0.0
    %54 = vmatpush1.xpose.msra.mxu0 0.0
    %55 = vmatprep.subr.mxu0 0.0
    %56 = vmatpush1.xpose.msra.mxu0 0.0
    %57 = vmatprep.subr.mxu0 0.0
    %58 = vmatpush1.xpose.msra.mxu0 0.0
    %59 = vmatprep.subr.mxu0 0.0
    %60 = vmatpush1.xpose.msra.mxu0 0.0
    %61 = vmatprep.subr.mxu0 0.0
    %62 = vmatpush1.xpose.msra.mxu0 0.0
    %63 = vmatprep.subr.mxu0 0.0
    %64 = vmatpush1.xpose.msra.mxu0 0.0
    %65 = vmatprep.subr.mxu0 0.0
    %66 = vmatpush1.xpose.msra.mxu0 0.0
    %67 = vmatprep.subr.mxu0 0.0
    %68 = vmatpush1.xpose.msra.mxu0 0.0
    %69 = vmatprep.subr.mxu0 0.0
    %70 = vmatpush1.xpose.msra.mxu0 0.0
    %71 = vmatprep.subr.mxu0 0.0
    %72 = vmatpush1.xpose.msra.mxu0 0.0
    %73 = vmatprep.subr.mxu0 0.0
    %74 = vmatpush1.xpose.msra.mxu0 0.0
    %75 = vmatprep.subr.mxu0 0.0
    %76 = vmatpush1.xpose.msra.mxu0 0.0
    %77 = vmatprep.subr.mxu0 0.0
    %78 = vmatpush1.xpose.msra.mxu0 0.0
    %79 = vmatprep.subr.mxu0 0.0
    %80 = vmatpush1.xpose.msra.mxu0 0.0
    %81 = vmatprep.subr.mxu0 0.0
    %82 = vmatpush1.xpose.msra.mxu0 0.0
    %83 = vmatprep.subr.mxu0 0.0
    %84 = vmatpush1.xpose.msra.mxu0 0.0
    %85 = vmatprep.subr.mxu0 0.0
    %86 = vmatpush1.xpose.msra.mxu0 0.0
    %87 = vmatprep.subr.mxu0 0.0
    %88 = vmatpush1.xpose.msra.mxu0 0.0
    %89 = vmatprep.subr.mxu0 0.0
    %90 = vmatpush1.xpose.msra.mxu0 0.0
    %91 = vmatprep.subr.mxu0 0.0
    %92 = vmatpush1.xpose.msra.mxu0 0.0
    %93 = vmatprep.subr.mxu0 0.0
    %94 = vmatpush1.xpose.msra.mxu0 0.0
    %95 = vmatprep.mubr.f32.mxu0 0.0
    %96 = vmatmul.mubr.f32.gmra.mrb[0].mxu0 %v26
    %v97 = vpop.f32.mrb[0].mxu0
    %v98 = vadd.f32 0.0, %v97
    %v99 = vpop.f32.mrb[0].mxu0
    %100 = vdwg.mxu0
    %v101 = vsub.f32 %v98, 29.406033
    %vm102 = vcmask 57344
    %103 = vst.msk [vmem:[#allocation5] sm:$0x1] %vm102, %v101
    // Predicated region
    $region10: #{flow_forward_and_log_prob.1} parent=1 // pred_check
      _
    $region11: #{flow_forward_and_log_prob.1} parent=1 // pred_check_branch
      %105 = sbr.rel (0) target = $region13
    $region12: #{flow_forward_and_log_prob.1} parent=1 // pred_region
      %s107 = ssub.s32 16, 16
      %108 = vsyncadd [#allocation4], %s107
      %s110 = sshll.u32 [#allocation5], 4
      %s111 = int_to_ptr.vmem [resolvable:$true] %s110
      %113 = dma.vmem_to_hbm [thread:$0]  %s111, 16, %s1, [#allocation4]
    $region13: #{flow_forward_and_log_prob.1} parent=1 // pred_fallthru
      _
    // Predicated region
    $region14: #{flow_forward_and_log_prob.1} parent=1 // pred_check
      _
    $region15: #{flow_forward_and_log_prob.1} parent=1 // pred_check_branch
      %115 = sbr.rel (0) target = $region17
    $region16: #{flow_forward_and_log_prob.1} parent=1 // pred_region
      %116 = dma.done [#allocation4], 16
    $region17: #{flow_forward_and_log_prob.1} parent=1 // pred_fallthru
      _
    %117 = vsyncpa [#allocation3], 1
    %118 = vsyncpa [#allocation4], 1

</llo_original>
